<compile_context>
chip_gen: v7x
topology: tpu7x:2x2x1
jax: 0.10.0
libtpu: 0.0.40
codegen_flags: <defaults>
</compile_context>

<pallas_src>
import jax
import jax.numpy as jnp
import numpy as np
from jax.experimental import pallas as pl
from jax.experimental.pallas import tpu as pltpu


def _make_block_kernel(apply_final_relu, Bt, H, L):
    """Fused BasicBlock kernel on lane-packed (Bt, H, W*C) slabs."""
    M = Bt * H

    def kernel(x_ref, b1_ref, s1_ref, c1_ref, b2_ref, s2_ref, c2_ref, o_ref):
        # (Bt, H, L) -> (M, L); H % 8 == 0 so this collapse is a layout no-op.
        x = x_ref[...].reshape(M, L).astype(jnp.float32)

        # Per-image row index along the stacked M axis: rolled taps must be
        # zeroed at every image boundary so the conv does not leak across
        # images in the batch tile.
        row = jax.lax.broadcasted_iota(jnp.int32, (M, 1), 0) % H
        not_top = (row != 0).astype(jnp.float32)       # row r-1 exists in-image
        not_bot = (row != H - 1).astype(jnp.float32)   # row r+1 exists in-image

        def conv3x3(inp, band_ref):
            # kh taps via XLU row rolls, masked at image boundaries, then
            # lane-concatenated so the 3 taps become a single K=3L MXU matmul.
            dn = pltpu.roll(inp, shift=1, axis=0) * not_top       # inp[r-1]
            up = pltpu.roll(inp, shift=M - 1, axis=0) * not_bot   # inp[r+1]
            lhs = jnp.concatenate([dn, inp, up], axis=-1).astype(jnp.bfloat16)
            return jnp.dot(lhs, band_ref[...], preferred_element_type=jnp.float32)

        # conv1 -> folded BN1 -> relu   (epilogue kept in f32).
        h = jnp.maximum(conv3x3(x, b1_ref) * s1_ref[...] + c1_ref[...], 0.0)
        # conv2 -> folded BN2 -> + identity -> (relu).
        out = conv3x3(h, b2_ref) * s2_ref[...] + c2_ref[...] + x
        if apply_final_relu:
            out = jnp.maximum(out, 0.0)
        o_ref[...] = out.reshape(Bt, H, L).astype(o_ref.dtype)

    return kernel


def _banded_weights(w_hwio, W):
    """Fold the 3 kw taps + width zero-padding of a 3x3 conv into per-kh
    (W*Cin, W*Cout) banded matrices, stacked along the contraction axis:
    B[kh*W*Cin + w_in*Cin + ci, w_out*Cout + co] = w[kh, kw, ci, co]
    with w_in = w_out + kw - 1 (out-of-range => 0)."""
    KH, KW, Cin, Cout = w_hwio.shape
    bands = []
    for kh in range(KH):
        b = jnp.zeros((W * Cin, W * Cout), jnp.float32)
        for kw in range(KW):
            shift = jnp.eye(W, k=1 - kw, dtype=jnp.float32)
            b = b + jnp.kron(shift, w_hwio[kh, kw].astype(jnp.float32))
        bands.append(b)
    return jnp.concatenate(bands, axis=0)      # (3*W*Cin, W*Cout)


def prepare_basic_block(params, W):
    """Precompute all kernel-side constants ONCE per network (hoisted out of the
    per-call path).  Banded weights go to bf16 for the MXU; BN stays f32."""
    KH, KW, Cin, Cmid = params["w1"].shape
    Cout = params["w2"].shape[-1]
    assert Cin == Cmid == Cout, "fused kernel covers downsample=None / stride=1"
    L = W * Cin
    return dict(
        L=L, C=Cin, W=W,
        b1=_banded_weights(params["w1"], W).astype(jnp.bfloat16),   # (3L, L)
        b2=_banded_weights(params["w2"], W).astype(jnp.bfloat16),   # (3L, L)
        s1=jnp.tile(params["scale1"].astype(jnp.float32), W).reshape(1, L),
        c1=jnp.tile(params["bias1"].astype(jnp.float32), W).reshape(1, L),
        s2=jnp.tile(params["scale2"].astype(jnp.float32), W).reshape(1, L),
        c2=jnp.tile(params["bias2"].astype(jnp.float32), W).reshape(1, L),
    )


def _pick_bt(N, H, max_m=256):
    """Largest per-step batch tile (divisor of N) with Bt*H <= max_m matmul rows,
    preferring >= 2 grid steps so both v7x TensorCores get work."""
    divs = [d for d in range(1, N + 1) if N % d == 0 and d * H <= max_m] or [1]
    multi = [d for d in divs if N // d >= 2]
    return max(multi if multi else divs)


def basic_block_forward_packed(x_packed, prep, fake_relu=False, no_relu=False):
    """BasicBlock.forward on lane-packed (N, H, W*C) activations."""
    N, H, L = x_packed.shape
    assert L == prep["L"] and L % 128 == 0 and H % 8 == 0
    Bt = _pick_bt(N, H)
    apply_final_relu = fake_relu or (not no_relu)
    kernel = _make_block_kernel(apply_final_relu, Bt, H, L)

    return pl.pallas_call(
        kernel,
        out_shape=jax.ShapeDtypeStruct((N, H, L), x_packed.dtype),
        grid_spec=pltpu.PrefetchScalarGridSpec(
            num_scalar_prefetch=0,
            grid=(N // Bt,),
            in_specs=[
                pl.BlockSpec((Bt, H, L), lambda b: (b, 0, 0)),    # input / residual
                pl.BlockSpec((3 * L, L), lambda b: (0, 0)),       # banded conv1 (bf16)
                pl.BlockSpec((1, L), lambda b: (0, 0)),           # bn1 scale (tiled over W)
                pl.BlockSpec((1, L), lambda b: (0, 0)),           # bn1 bias
                pl.BlockSpec((3 * L, L), lambda b: (0, 0)),       # banded conv2 (bf16)
                pl.BlockSpec((1, L), lambda b: (0, 0)),           # bn2 scale
                pl.BlockSpec((1, L), lambda b: (0, 0)),           # bn2 bias
            ],
            out_specs=pl.BlockSpec((Bt, H, L), lambda b: (b, 0, 0)),
        ),
        compiler_params=pltpu.CompilerParams(dimension_semantics=("parallel",)),
    )(x_packed, prep["b1"], prep["s1"], prep["c1"],
      prep["b2"], prep["s2"], prep["c2"])


def basic_block_forward(x_nchw, prep, fake_relu=False, no_relu=False):
    """NCHW wrapper.  In a full network the packed (N, H, W*C) layout would be
    kept between blocks; these transposes only sit at the model boundary."""
    N, C, H, W = x_nchw.shape
    assert C == prep["C"] and W == prep["W"]
    x_packed = jnp.transpose(x_nchw, (0, 2, 3, 1)).reshape(N, H, W * C)
    out = basic_block_forward_packed(x_packed, prep, fake_relu, no_relu)
    return jnp.transpose(out.reshape(N, H, W, C), (0, 3, 1, 2))


def _fold_bn(gamma, beta, mean, var, eps=1e-5):
    scale = gamma / jnp.sqrt(var + eps)
    bias = beta - mean * scale
    return scale, bias


if __name__ == "__main__":
    key = jax.random.PRNGKey(0)
    N, C, H, W = 2, 8, 16, 16          # inplanes == planes == 8, stride = 1; W*C = 128
    planes = C
    ks = jax.random.split(key, 11)

    x = jax.random.normal(ks[0], (N, C, H, W), jnp.float32)

    # conv weights stored HWIO (deterministic synthetic init)
    w1 = 0.1 * jax.random.normal(ks[1], (3, 3, C, planes), jnp.float32)
    w2 = 0.1 * jax.random.normal(ks[2], (3, 3, planes, planes), jnp.float32)

    # BatchNorm parameters / running stats (inference form)
    g1 = 1.0 + 0.1 * jax.random.normal(ks[3], (planes,), jnp.float32)
    be1 = 0.1 * jax.random.normal(ks[4], (planes,), jnp.float32)
    m1 = 0.1 * jax.random.normal(ks[5], (planes,), jnp.float32)
    v1 = jax.random.uniform(ks[6], (planes,), jnp.float32, 0.5, 1.5)
    g2 = 1.0 + 0.1 * jax.random.normal(ks[7], (planes,), jnp.float32)
    be2 = 0.1 * jax.random.normal(ks[8], (planes,), jnp.float32)
    m2 = 0.1 * jax.random.normal(ks[9], (planes,), jnp.float32)
    v2 = jax.random.uniform(ks[10], (planes,), jnp.float32, 0.5, 1.5)

    s1, bb1 = _fold_bn(g1, be1, m1, v1)
    s2, bb2 = _fold_bn(g2, be2, m2, v2)
    params = dict(w1=w1, scale1=s1, bias1=bb1, w2=w2, scale2=s2, bias2=bb2)

    prep = prepare_basic_block(params, W)          # once per network, not per call
    fwd = jax.jit(lambda xx: basic_block_forward(xx, prep))
    out = jax.block_until_ready(fwd(x))

    # pure-JAX f32 reference for correctness
    def ref_conv(xh, w):
        return jax.lax.conv_general_dilated(
            xh, w, window_strides=(1, 1), padding=((1, 1), (1, 1)),
            dimension_numbers=("NHWC", "HWIO", "NHWC"))

    xh = jnp.transpose(x, (0, 2, 3, 1))
    r = jnp.maximum(ref_conv(xh, w1) * s1 + bb1, 0.0)
    r = ref_conv(r, w2) * s2 + bb2 + xh
    r = jnp.maximum(r, 0.0)
    r = jnp.transpose(r, (0, 3, 1, 2))

    assert out.shape == x.shape and out.dtype == x.dtype
    # bf16 MXU operands (f32 accumulation) -> slightly looser tolerance than pure f32.
    np.testing.assert_allclose(np.asarray(out), np.asarray(r), atol=3e-2, rtol=2e-2)
    print("KERNEL_OK")
</pallas_src>

<mosaic_0001>
module attributes {stable_mosaic.version = 11 : i64} {
  func.func @kernel(%arg0: i32, %arg1: memref<1x16x128xf32, #tpu.memory_space<vmem>>, %arg2: memref<384x128xbf16, #tpu.memory_space<vmem>>, %arg3: memref<1x128xf32, #tpu.memory_space<vmem>>, %arg4: memref<1x128xf32, #tpu.memory_space<vmem>>, %arg5: memref<384x128xbf16, #tpu.memory_space<vmem>>, %arg6: memref<1x128xf32, #tpu.memory_space<vmem>>, %arg7: memref<1x128xf32, #tpu.memory_space<vmem>>, %arg8: memref<1x16x128xf32, #tpu.memory_space<vmem>>) attributes {dimension_semantics = [#tpu.dimension_semantics<parallel>], iteration_bounds = array<i64: 2>, scalar_prefetch = 0 : i64, scratch_operands = 0 : i64, tpu.core_type = #tpu.core_type<tc>, window_params = [{transform_indices = @transform_0, window_bounds = array<i64: 1, 16, 128>}, {pipeline_mode = #tpu.pipeline_mode<synchronous>, transform_indices = @transform_1, window_bounds = array<i64: 384, 128>}, {pipeline_mode = #tpu.pipeline_mode<synchronous>, transform_indices = @transform_2, window_bounds = array<i64: 1, 128>}, {pipeline_mode = #tpu.pipeline_mode<synchronous>, transform_indices = @transform_3, window_bounds = array<i64: 1, 128>}, {pipeline_mode = #tpu.pipeline_mode<synchronous>, transform_indices = @transform_4, window_bounds = array<i64: 384, 128>}, {pipeline_mode = #tpu.pipeline_mode<synchronous>, transform_indices = @transform_5, window_bounds = array<i64: 1, 128>}, {pipeline_mode = #tpu.pipeline_mode<synchronous>, transform_indices = @transform_6, window_bounds = array<i64: 1, 128>}, {transform_indices = @transform_7, window_bounds = array<i64: 1, 16, 128>}]} {
    %c0 = arith.constant 0 : index
    %c0_0 = arith.constant 0 : index
    %c0_1 = arith.constant 0 : index
    %0 = vector.load %arg1[%c0, %c0_0, %c0_1] : memref<1x16x128xf32, #tpu.memory_space<vmem>>, vector<1x16x128xf32>
    %1 = vector.shape_cast %0 : vector<1x16x128xf32> to vector<16x128xf32>
    %2 = tpu.iota {dimensions = array<i32: 0>} : vector<16x1xi32>
    %c16_i32 = arith.constant 16 : i32
    %c0_i32 = arith.constant 0 : i32
    %3 = arith.cmpi eq, %c16_i32, %c0_i32 : i32
    %c1_i32 = arith.constant 1 : i32
    %4 = arith.select %3, %c1_i32, %c16_i32 : i32
    %5 = vector.broadcast %4 : i32 to vector<16x1xi32>
    %6 = arith.remsi %2, %5 : vector<16x1xi32>
    %c0_i32_2 = arith.constant 0 : i32
    %7 = vector.broadcast %c0_i32_2 : i32 to vector<16x1xi32>
    %8 = arith.cmpi ne, %6, %7 : vector<16x1xi32>
    %c0_i32_3 = arith.constant 0 : i32
    %9 = vector.broadcast %c0_i32_3 : i32 to vector<16x1xi32>
    %10 = arith.cmpi slt, %6, %9 : vector<16x1xi32>
    %c0_i32_4 = arith.constant 0 : i32
    %11 = arith.cmpi slt, %4, %c0_i32_4 : i32
    %12 = vector.broadcast %11 : i1 to vector<16x1xi1>
    %13 = vector.broadcast %12 : vector<16x1xi1> to vector<16x1xi1>
    %14 = arith.xori %10, %13 : vector<16x1xi1>
    %15 = arith.andi %14, %8 : vector<16x1xi1>
    %16 = vector.broadcast %4 : i32 to vector<16x1xi32>
    %17 = arith.addi %6, %16 : vector<16x1xi32>
    %18 = arith.select %15, %17, %6 : vector<16x1xi1>, vector<16x1xi32>
    %c0_i32_5 = arith.constant 0 : i32
    %19 = vector.broadcast %c0_i32_5 : i32 to vector<16x1xi32>
    %20 = arith.cmpi ne, %18, %19 : vector<16x1xi32>
    %21 = arith.extui %20 : vector<16x1xi1> to vector<16x1xi32>
    %22 = arith.sitofp %21 : vector<16x1xi32> to vector<16x1xf32>
    %c15_i32 = arith.constant 15 : i32
    %23 = vector.broadcast %c15_i32 : i32 to vector<16x1xi32>
    %24 = arith.cmpi ne, %18, %23 : vector<16x1xi32>
    %25 = arith.extui %24 : vector<16x1xi1> to vector<16x1xi32>
    %26 = arith.sitofp %25 : vector<16x1xi32> to vector<16x1xf32>
    %c1_i32_6 = arith.constant 1 : i32
    %27 = tpu.dynamic_rotate %1 by %c1_i32_6 dim 0 : vector<16x128xf32>, i32 -> vector<16x128xf32>
    %28 = vector.broadcast %22 : vector<16x1xf32> to vector<16x128xf32>
    %29 = arith.mulf %27, %28 : vector<16x128xf32>
    %c15_i32_7 = arith.constant 15 : i32
    %30 = tpu.dynamic_rotate %1 by %c15_i32_7 dim 0 : vector<16x128xf32>, i32 -> vector<16x128xf32>
    %31 = vector.broadcast %26 : vector<16x1xf32> to vector<16x128xf32>
    %32 = arith.mulf %30, %31 : vector<16x128xf32>
    %33 = tpu.concatenate %29, %1, %32 in 1 : vector<16x128xf32>, vector<16x128xf32>, vector<16x128xf32> -> vector<16x384xf32>
    %34 = arith.truncf %33 : vector<16x384xf32> to vector<16x384xbf16>
    %c0_8 = arith.constant 0 : index
    %c0_9 = arith.constant 0 : index
    %35 = vector.load %arg2[%c0_8, %c0_9] : memref<384x128xbf16, #tpu.memory_space<vmem>>, vector<384x128xbf16>
    %cst = arith.constant dense<0.000000e+00> : vector<16x128xf32>
    %36 = tpu.matmul %34, %35, %cst {dimension_numbers = #tpu.dot_dimension_numbers<[1], [0], [0], [1], [0, 0, 1, 1], [], []>} : vector<16x384xbf16>, vector<384x128xbf16>, vector<16x128xf32> -> vector<16x128xf32>
    %c0_10 = arith.constant 0 : index
    %c0_11 = arith.constant 0 : index
    %37 = vector.load %arg3[%c0_10, %c0_11] : memref<1x128xf32, #tpu.memory_space<vmem>>, vector<1x128xf32>
    %38 = vector.broadcast %37 : vector<1x128xf32> to vector<16x128xf32>
    %39 = arith.mulf %36, %38 : vector<16x128xf32>
    %c0_12 = arith.constant 0 : index
    %c0_13 = arith.constant 0 : index
    %40 = vector.load %arg4[%c0_12, %c0_13] : memref<1x128xf32, #tpu.memory_space<vmem>>, vector<1x128xf32>
    %41 = vector.broadcast %40 : vector<1x128xf32> to vector<16x128xf32>
    %42 = arith.addf %39, %41 : vector<16x128xf32>
    %cst_14 = arith.constant 0.000000e+00 : f32
    %43 = vector.broadcast %cst_14 : f32 to vector<16x128xf32>
    %44 = arith.maximumf %42, %43 : vector<16x128xf32>
    %c1_i32_15 = arith.constant 1 : i32
    %45 = tpu.dynamic_rotate %44 by %c1_i32_15 dim 0 : vector<16x128xf32>, i32 -> vector<16x128xf32>
    %46 = vector.broadcast %22 : vector<16x1xf32> to vector<16x128xf32>
    %47 = arith.mulf %45, %46 : vector<16x128xf32>
    %c15_i32_16 = arith.constant 15 : i32
    %48 = tpu.dynamic_rotate %44 by %c15_i32_16 dim 0 : vector<16x128xf32>, i32 -> vector<16x128xf32>
    %49 = vector.broadcast %26 : vector<16x1xf32> to vector<16x128xf32>
    %50 = arith.mulf %48, %49 : vector<16x128xf32>
    %51 = tpu.concatenate %47, %44, %50 in 1 : vector<16x128xf32>, vector<16x128xf32>, vector<16x128xf32> -> vector<16x384xf32>
    %52 = arith.truncf %51 : vector<16x384xf32> to vector<16x384xbf16>
    %c0_17 = arith.constant 0 : index
    %c0_18 = arith.constant 0 : index
    %53 = vector.load %arg5[%c0_17, %c0_18] : memref<384x128xbf16, #tpu.memory_space<vmem>>, vector<384x128xbf16>
    %cst_19 = arith.constant dense<0.000000e+00> : vector<16x128xf32>
    %54 = tpu.matmul %52, %53, %cst_19 {dimension_numbers = #tpu.dot_dimension_numbers<[1], [0], [0], [1], [0, 0, 1, 1], [], []>} : vector<16x384xbf16>, vector<384x128xbf16>, vector<16x128xf32> -> vector<16x128xf32>
    %c0_20 = arith.constant 0 : index
    %c0_21 = arith.constant 0 : index
    %55 = vector.load %arg6[%c0_20, %c0_21] : memref<1x128xf32, #tpu.memory_space<vmem>>, vector<1x128xf32>
    %56 = vector.broadcast %55 : vector<1x128xf32> to vector<16x128xf32>
    %57 = arith.mulf %54, %56 : vector<16x128xf32>
    %c0_22 = arith.constant 0 : index
    %c0_23 = arith.constant 0 : index
    %58 = vector.load %arg7[%c0_22, %c0_23] : memref<1x128xf32, #tpu.memory_space<vmem>>, vector<1x128xf32>
    %59 = vector.broadcast %58 : vector<1x128xf32> to vector<16x128xf32>
    %60 = arith.addf %57, %59 : vector<16x128xf32>
    %61 = arith.addf %60, %1 : vector<16x128xf32>
    %cst_24 = arith.constant 0.000000e+00 : f32
    %62 = vector.broadcast %cst_24 : f32 to vector<16x128xf32>
    %63 = arith.maximumf %61, %62 : vector<16x128xf32>
    %64 = vector.shape_cast %63 : vector<16x128xf32> to vector<1x16x128xf32>
    %c0_25 = arith.constant 0 : index
    %c0_26 = arith.constant 0 : index
    %c0_27 = arith.constant 0 : index
    %65 = vector.load %arg8[%c0_25, %c0_26, %c0_27] : memref<1x16x128xf32, #tpu.memory_space<vmem>>, vector<1x16x128xf32>
    tpu.vector_store %arg8[%c0_25, %c0_26, %c0_27], %64 {strides = array<i32>} : memref<1x16x128xf32, #tpu.memory_space<vmem>>, vector<1x16x128xf32>,
    return
  }
  func.func @transform_0(%arg0: i32) -> (i32, i32, i32) {
    %c0_i32 = arith.constant 0 : i32
    %c0_i32_0 = arith.constant 0 : i32
    %c0_i32_1 = arith.constant 0 : i32
    return %arg0, %c0_i32, %c0_i32_0 : i32, i32, i32
  }
  func.func @transform_1(%arg0: i32) -> (i32, i32) {
    %c0_i32 = arith.constant 0 : i32
    %c0_i32_0 = arith.constant 0 : i32
    %c0_i32_1 = arith.constant 0 : i32
    return %c0_i32, %c0_i32_0 : i32, i32
  }
  func.func @transform_2(%arg0: i32) -> (i32, i32) {
    %c0_i32 = arith.constant 0 : i32
    %c0_i32_0 = arith.constant 0 : i32
    %c0_i32_1 = arith.constant 0 : i32
    return %c0_i32, %c0_i32_0 : i32, i32
  }
  func.func @transform_3(%arg0: i32) -> (i32, i32) {
    %c0_i32 = arith.constant 0 : i32
    %c0_i32_0 = arith.constant 0 : i32
    %c0_i32_1 = arith.constant 0 : i32
    return %c0_i32, %c0_i32_0 : i32, i32
  }
  func.func @transform_4(%arg0: i32) -> (i32, i32) {
    %c0_i32 = arith.constant 0 : i32
    %c0_i32_0 = arith.constant 0 : i32
    %c0_i32_1 = arith.constant 0 : i32
    return %c0_i32, %c0_i32_0 : i32, i32
  }
  func.func @transform_5(%arg0: i32) -> (i32, i32) {
    %c0_i32 = arith.constant 0 : i32
    %c0_i32_0 = arith.constant 0 : i32
    %c0_i32_1 = arith.constant 0 : i32
    return %c0_i32, %c0_i32_0 : i32, i32
  }
  func.func @transform_6(%arg0: i32) -> (i32, i32) {
    %c0_i32 = arith.constant 0 : i32
    %c0_i32_0 = arith.constant 0 : i32
    %c0_i32_1 = arith.constant 0 : i32
    return %c0_i32, %c0_i32_0 : i32, i32
  }
  func.func @transform_7(%arg0: i32) -> (i32, i32, i32) {
    %c0_i32 = arith.constant 0 : i32
    %c0_i32_0 = arith.constant 0 : i32
    %c0_i32_1 = arith.constant 0 : i32
    return %arg0, %c0_i32, %c0_i32_0 : i32, i32, i32
  }
}

</mosaic_0001>

<llo_original>
// kernel: _lambda_.1
$region0: #{_lambda_.1}
  #allocation0 [shape = 'u32[]', space=smem, size = 0x4, offset = 0x4, fixed_abs, tag = 'smem constant byte address 0x4 - core index']
  #allocation1 [shape = 'u32[144,128]{1,0:T(1,128)}', space=vmem, size = 0x12000, scoped, tag = 'internal scratch']
  %s0 = inlined_call_operand.vmem [shape: f32[2,16,128], index: 0, kind: input, shape index: {}]
  %s1 = inlined_call_operand.vmem [shape: bf16[384,128], index: 1, kind: input, shape index: {}]
  %s2 = inlined_call_operand.vmem [shape: f32[1,128], index: 2, kind: input, shape index: {}]
  %s3 = inlined_call_operand.vmem [shape: f32[1,128], index: 3, kind: input, shape index: {}]
  %s4 = inlined_call_operand.vmem [shape: bf16[384,128], index: 4, kind: input, shape index: {}]
  %s5 = inlined_call_operand.vmem [shape: f32[1,128], index: 5, kind: input, shape index: {}]
  %s6 = inlined_call_operand.vmem [shape: f32[1,128], index: 6, kind: input, shape index: {}]
  %s7 = inlined_call_operand.vmem [shape: f32[2,16,128], index: 7, kind: output, shape index: {}]
  %s8 = sld [smem:[#allocation0]]
  $region61: #{_lambda_.1} parent=0
    _
  %s10 = ssub.s32 1, %s8
  %s11 = scalar_select 0, %s10, %s8
  loop: start=0, step=1, limit=4
  $region2: #{_lambda_.1} parent=0 // loop_pre_header
    _
  $region3: #{_lambda_.1} parent=0 // loop_header
    %s13 = sphi 0, %s17
    %p14 = scmp.ge.s32.totalorder %s13, 4
    %s23 = sphi 0, %s25
    %s26 = sphi 0, %s23
    %s27 = sphi 0, %s26
    %s43 = sphi 0, %s27
    %s47 = sphi 0, %s47
    %s49 = sphi 0, %s47
    %s50 = sphi 0, %s49
    %s64 = sphi 0, %s50
    %s68 = sphi 0, %s68
    %s70 = sphi 0, %s68
    %s71 = sphi 0, %s70
    %s85 = sphi 0, %s71
    %s89 = sphi 0, %s89
    %s91 = sphi 0, %s89
    %s92 = sphi 0, %s91
    %s106 = sphi 0, %s92
    %s110 = sphi 0, %s110
    %s112 = sphi 0, %s110
    %s113 = sphi 0, %s112
    %s127 = sphi 0, %s113
    %s131 = sphi 0, %s131
    %s133 = sphi 0, %s131
    %s134 = sphi 0, %s133
    %s148 = sphi 0, %s134
    %s152 = sphi 0, %s152
    %s154 = sphi 0, %s152
    %s155 = sphi 0, %s154
    %s169 = sphi 0, %s155
    %s175 = sphi 0, %s177
    %s178 = sphi 0, %s175
    %s179 = sphi 0, %s178
    %s195 = sphi 0, %s179
  $region4: #{_lambda_.1} parent=0 // loop_header_branch
    %16 = sbr.rel (%p14) target = $region8
  $region5: #{_lambda_.1} parent=0 // loop_body
    %s18 = ssub.s32 %s13, 1
    %s19 = ssub.s32 %s13, 2
    %s20 = sadd.s32 %s13, 1
    %s21 = ssub.s32 %s13, %s20
    %p22 = scmp.eq.s32.totalorder %s21, 0
    %s24 = sadd.s32 %s23, 1
    %s25 = scalar_select %p22, %s23, %s24
    %p28 = pneg %p22
    %p29 = scmp.eq.s32.totalorder %s13, 1
    %p30 = por %p28, %p29
    %p31 = scmp.ne.s32.totalorder %s23, %s26
    %p32 = scmp.eq.s32.totalorder %s13, 0
    %p33 = por %p31, %p32
    %p34 = scmp.ne.s32.totalorder %s23, %s26
    %p35 = scmp.eq.s32.totalorder %s18, 1
    %p36 = por %p34, %p35
    %p37 = scmp.ne.s32.totalorder %s26, %s27
    %p38 = scmp.eq.s32.totalorder %s18, 0
    %p39 = por %p37, %p38
    %p40 = scmp.ne.s32.totalorder %s26, %s27
    %p41 = scmp.eq.s32.totalorder %s19, 1
    %p42 = por %p40, %p41
    %p44 = scmp.ne.s32.totalorder %s27, %s43
    %p45 = scmp.eq.s32.totalorder %s19, 0
    %p46 = por %p44, %p45
    %s48 = sadd.s32 %s47, 1
    %p51 = scmp.eq.s32.totalorder %s13, 1
    %p52 = scmp.ne.s32.totalorder %s47, %s49
    %p53 = scmp.eq.s32.totalorder %s13, 0
    %p54 = por %p52, %p53
    %p55 = scmp.ne.s32.totalorder %s47, %s49
    %p56 = scmp.eq.s32.totalorder %s18, 1
    %p57 = por %p55, %p56
    %p58 = scmp.ne.s32.totalorder %s49, %s50
    %p59 = scmp.eq.s32.totalorder %s18, 0
    %p60 = por %p58, %p59
    %p61 = scmp.ne.s32.totalorder %s49, %s50
    %p62 = scmp.eq.s32.totalorder %s19, 1
    %p63 = por %p61, %p62
    %p65 = scmp.ne.s32.totalorder %s50, %s64
    %p66 = scmp.eq.s32.totalorder %s19, 0
    %p67 = por %p65, %p66
    %s69 = sadd.s32 %s68, 1
    %p72 = scmp.eq.s32.totalorder %s13, 1
    %p73 = scmp.ne.s32.totalorder %s68, %s70
    %p74 = scmp.eq.s32.totalorder %s13, 0
    %p75 = por %p73, %p74
    %p76 = scmp.ne.s32.totalorder %s68, %s70
    %p77 = scmp.eq.s32.totalorder %s18, 1
    %p78 = por %p76, %p77
    %p79 = scmp.ne.s32.totalorder %s70, %s71
    %p80 = scmp.eq.s32.totalorder %s18, 0
    %p81 = por %p79, %p80
    %p82 = scmp.ne.s32.totalorder %s70, %s71
    %p83 = scmp.eq.s32.totalorder %s19, 1
    %p84 = por %p82, %p83
    %p86 = scmp.ne.s32.totalorder %s71, %s85
    %p87 = scmp.eq.s32.totalorder %s19, 0
    %p88 = por %p86, %p87
    %s90 = sadd.s32 %s89, 1
    %p93 = scmp.eq.s32.totalorder %s13, 1
    %p94 = scmp.ne.s32.totalorder %s89, %s91
    %p95 = scmp.eq.s32.totalorder %s13, 0
    %p96 = por %p94, %p95
    %p97 = scmp.ne.s32.totalorder %s89, %s91
    %p98 = scmp.eq.s32.totalorder %s18, 1
    %p99 = por %p97, %p98
    %p100 = scmp.ne.s32.totalorder %s91, %s92
    %p101 = scmp.eq.s32.totalorder %s18, 0
    %p102 = por %p100, %p101
    %p103 = scmp.ne.s32.totalorder %s91, %s92
    %p104 = scmp.eq.s32.totalorder %s19, 1
    %p105 = por %p103, %p104
    %p107 = scmp.ne.s32.totalorder %s92, %s106
    %p108 = scmp.eq.s32.totalorder %s19, 0
    %p109 = por %p107, %p108
    %s111 = sadd.s32 %s110, 1
    %p114 = scmp.eq.s32.totalorder %s13, 1
    %p115 = scmp.ne.s32.totalorder %s110, %s112
    %p116 = scmp.eq.s32.totalorder %s13, 0
    %p117 = por %p115, %p116
    %p118 = scmp.ne.s32.totalorder %s110, %s112
    %p119 = scmp.eq.s32.totalorder %s18, 1
    %p120 = por %p118, %p119
    %p121 = scmp.ne.s32.totalorder %s112, %s113
    %p122 = scmp.eq.s32.totalorder %s18, 0
    %p123 = por %p121, %p122
    %p124 = scmp.ne.s32.totalorder %s112, %s113
    %p125 = scmp.eq.s32.totalorder %s19, 1
    %p126 = por %p124, %p125
    %p128 = scmp.ne.s32.totalorder %s113, %s127
    %p129 = scmp.eq.s32.totalorder %s19, 0
    %p130 = por %p128, %p129
    %s132 = sadd.s32 %s131, 1
    %p135 = scmp.eq.s32.totalorder %s13, 1
    %p136 = scmp.ne.s32.totalorder %s131, %s133
    %p137 = scmp.eq.s32.totalorder %s13, 0
    %p138 = por %p136, %p137
    %p139 = scmp.ne.s32.totalorder %s131, %s133
    %p140 = scmp.eq.s32.totalorder %s18, 1
    %p141 = por %p139, %p140
    %p142 = scmp.ne.s32.totalorder %s133, %s134
    %p143 = scmp.eq.s32.totalorder %s18, 0
    %p144 = por %p142, %p143
    %p145 = scmp.ne.s32.totalorder %s133, %s134
    %p146 = scmp.eq.s32.totalorder %s19, 1
    %p147 = por %p145, %p146
    %p149 = scmp.ne.s32.totalorder %s134, %s148
    %p150 = scmp.eq.s32.totalorder %s19, 0
    %p151 = por %p149, %p150
    %s153 = sadd.s32 %s152, 1
    %p156 = scmp.eq.s32.totalorder %s13, 1
    %p157 = scmp.ne.s32.totalorder %s152, %s154
    %p158 = scmp.eq.s32.totalorder %s13, 0
    %p159 = por %p157, %p158
    %p160 = scmp.ne.s32.totalorder %s152, %s154
    %p161 = scmp.eq.s32.totalorder %s18, 1
    %p162 = por %p160, %p161
    %p163 = scmp.ne.s32.totalorder %s154, %s155
    %p164 = scmp.eq.s32.totalorder %s18, 0
    %p165 = por %p163, %p164
    %p166 = scmp.ne.s32.totalorder %s154, %s155
    %p167 = scmp.eq.s32.totalorder %s19, 1
    %p168 = por %p166, %p167
    %p170 = scmp.ne.s32.totalorder %s155, %s169
    %p171 = scmp.eq.s32.totalorder %s19, 0
    %p172 = por %p170, %p171
    %s173 = ssub.s32 %s13, %s20
    %p174 = scmp.eq.s32.totalorder %s173, 0
    %s176 = sadd.s32 %s175, 1
    %s177 = scalar_select %p174, %s175, %s176
    %p180 = pneg %p174
    %p181 = scmp.eq.s32.totalorder %s13, 1
    %p182 = por %p180, %p181
    %p183 = scmp.ne.s32.totalorder %s175, %s178
    %p184 = scmp.eq.s32.totalorder %s13, 0
    %p185 = por %p183, %p184
    %p186 = scmp.ne.s32.totalorder %s175, %s178
    %p187 = scmp.eq.s32.totalorder %s18, 1
    %p188 = por %p186, %p187
    %p189 = scmp.ne.s32.totalorder %s178, %s179
    %p190 = scmp.eq.s32.totalorder %s18, 0
    %p191 = por %p189, %p190
    %p192 = scmp.ne.s32.totalorder %s178, %s179
    %p193 = scmp.eq.s32.totalorder %s19, 1
    %p194 = por %p192, %p193
    %p196 = scmp.ne.s32.totalorder %s179, %s195
    %p197 = scmp.eq.s32.totalorder %s19, 0
    %p198 = por %p196, %p197
    %p199 = scmp.le.s32.totalorder 1, %s13
    %p200 = scmp.lt.s32.totalorder %s13, 3
    %p201 = pnand %p199, %p200
    %p202 = pneg %p201
    // Predicated region
    $region9: #{_lambda_.1} parent=5 // pred_check
      _
    $region10: #{_lambda_.1} parent=5 // pred_check_branch
      %204 = sbr.rel (%p201) target = $region12
    $region11: #{_lambda_.1} parent=5 // pred_region
      %s205 = ssub.s32 %s13, 1
      // Predicated region
      $region13: #{_lambda_.1} parent=11 // pred_check
        %p206 = pneg %p60
      $region14: #{_lambda_.1} parent=11 // pred_check_branch
        %208 = sbr.rel (%p206) target = $region16
      $region15: #{_lambda_.1} parent=11 // pred_region
        _
      $region16: #{_lambda_.1} parent=11 // pred_fallthru
        _
      // Predicated region
      $region17: #{_lambda_.1} parent=11 // pred_check
        %p209 = pneg %p81
      $region18: #{_lambda_.1} parent=11 // pred_check_branch
        %211 = sbr.rel (%p209) target = $region20
      $region19: #{_lambda_.1} parent=11 // pred_region
        _
      $region20: #{_lambda_.1} parent=11 // pred_fallthru
        _
      // Predicated region
      $region21: #{_lambda_.1} parent=11 // pred_check
        %p212 = pneg %p102
      $region22: #{_lambda_.1} parent=11 // pred_check_branch
        %214 = sbr.rel (%p212) target = $region24
      $region23: #{_lambda_.1} parent=11 // pred_region
        _
      $region24: #{_lambda_.1} parent=11 // pred_fallthru
        _
      // Predicated region
      $region25: #{_lambda_.1} parent=11 // pred_check
        %p215 = pneg %p123
      $region26: #{_lambda_.1} parent=11 // pred_check_branch
        %217 = sbr.rel (%p215) target = $region28
      $region27: #{_lambda_.1} parent=11 // pred_region
        _
      $region28: #{_lambda_.1} parent=11 // pred_fallthru
        _
      // Predicated region
      $region29: #{_lambda_.1} parent=11 // pred_check
        %p218 = pneg %p144
      $region30: #{_lambda_.1} parent=11 // pred_check_branch
        %220 = sbr.rel (%p218) target = $region32
      $region31: #{_lambda_.1} parent=11 // pred_region
        _
      $region32: #{_lambda_.1} parent=11 // pred_fallthru
        _
      // Predicated region
      $region33: #{_lambda_.1} parent=11 // pred_check
        %p221 = pneg %p165
      $region34: #{_lambda_.1} parent=11 // pred_check_branch
        %223 = sbr.rel (%p221) target = $region36
      $region35: #{_lambda_.1} parent=11 // pred_region
        _
      $region36: #{_lambda_.1} parent=11 // pred_fallthru
        _
    $region12: #{_lambda_.1} parent=5 // pred_fallthru
      _
    %p224 = scmp.lt.s32.totalorder %s13, 2
    // Predicated region
    $region37: #{_lambda_.1} parent=5 // pred_check
      %p225 = pneg %p224
    $region38: #{_lambda_.1} parent=5 // pred_check_branch
      %227 = sbr.rel (%p225) target = $region40
    $region39: #{_lambda_.1} parent=5 // pred_region
      // Predicated region
      $region41: #{_lambda_.1} parent=39 // pred_check
        %p228 = pneg %p33
      $region42: #{_lambda_.1} parent=39 // pred_check_branch
        %230 = sbr.rel (%p228) target = $region44
      $region43: #{_lambda_.1} parent=39 // pred_region
        %p231 = scmp.lt.s32.totalorder %s13, 1
        %s232 = scalar_select %p231, %s13, 1
        %s233 = smul.addr %s232, 2
        %s234 = smul.addr %s233, 8
        %s235 = scalar_lea.vmem %s0, %s234
      $region44: #{_lambda_.1} parent=39 // pred_fallthru
        _
    $region40: #{_lambda_.1} parent=5 // pred_fallthru
      _
    %p236 = scmp.le.s32.totalorder 1, %s13
    %p237 = scmp.lt.s32.totalorder %s13, 3
    %p238 = pnand %p236, %p237
    %p239 = pneg %p238
    // Predicated region
    $region45: #{_lambda_.1} parent=5 // pred_check
      _
    $region46: #{_lambda_.1} parent=5 // pred_check_branch
      %241 = sbr.rel (%p238) target = $region48
    $region47: #{_lambda_.1} parent=5 // pred_region
      %s242 = ssub.s32 %s13, 1
      %p243 = scmp.lt.s32.totalorder %s18, 1
      %s244 = scalar_select %p243, %s18, 1
      %s245 = smul.addr %s244, 2
      %s246 = smul.addr %s245, 8
      %s247 = scalar_lea.vmem %s0, %s246
      %p248 = pneg %p39
      %p249 = pneg %p36
      %p250 = pneg %p60
      %p251 = pneg %p57
      %p252 = pneg %p81
      %p253 = pneg %p78
      %p254 = pneg %p102
      %p255 = pneg %p99
      %p256 = pneg %p123
      %p257 = pneg %p120
      %p258 = pneg %p144
      %p259 = pneg %p141
      %p260 = pneg %p165
      %p261 = pneg %p162
      %p262 = pneg %p191
      %p263 = pneg %p188
      %p264 = scmp.lt.s32.totalorder %s18, 1
      %s265 = scalar_select %p264, %s18, 1
      %s266 = smul.addr %s265, 2
      %s267 = smul.addr %s266, 8
      %s268 = scalar_lea.vmem %s7, %s267
      %p269 = scmp.lt.s32.totalorder %s18, 1
      %s270 = scalar_select %p269, %s18, 1
      %s271 = smul.addr %s270, 2
      %s272 = smul.addr %s271, 8
      %s273 = scalar_lea.vmem %s0, %s272
      %p274 = scmp.lt.s32.totalorder %s18, 1
      %s275 = scalar_select %p274, %s18, 1
      %s276 = smul.addr %s275, 2
      %s277 = smul.addr %s276, 8
      %s278 = scalar_lea.vmem %s7, %s277
      %v280 = vld [vmem:[%s273] sm:$0xff]
      %v281 = vld [vmem:[%s273 + $0x8] sm:$0xff]
      %v282 = vlaneseq
      %v283 = vshrl.u32 %v282, 7
      %v284 = vadd.s32 %v283, 8
      %vm285 = vcmp.lt.s32.totalorder %v283, 0
      %v286 = vsub.s32 0, %v283
      %v287 = vsel %vm285, %v286, %v283
      %v288 = vshrl.u32 %v287, 4
      %v289 = vand.u32 %v287, 15
      %v290 = vsub.s32 0, %v289
      %v291 = vsel %vm285, %v290, %v289
      %vm292 = vcmp.lt.s32.totalorder %v284, 0
      %v293 = vsub.s32 0, %v284
      %v294 = vsel %vm292, %v293, %v284
      %v295 = vshrl.u32 %v294, 4
      %v296 = vand.u32 %v294, 15
      %v297 = vsub.s32 0, %v296
      %v298 = vsel %vm292, %v297, %v296
      %vm299 = vcmp.ne.s32.totalorder %v291, 0
      %vm300 = vcmp.ne.s32.totalorder %v298, 0
      %vm301 = vcmp.lt.s32.totalorder %v291, 0
      %vm302 = vcmp.lt.s32.totalorder %v298, 0
      %vm303 = vmand %vm301, %vm299
      %vm304 = vmand %vm302, %vm300
      %v305 = vadd.s32 %v291, 16
      %v306 = vadd.s32 %v298, 16
      %v307 = vsel %vm303, %v305, %v291
      %v308 = vsel %vm304, %v306, %v298
      %vm309 = vcmp.ne.s32.totalorder %v307, 0
      %vm310 = vcmp.ne.s32.totalorder %v308, 0
      %v311 = vsel %vm309, 1, 0
      %v312 = vsel %vm310, 1, 0
      %v313 = vcvt.s32.f32 %v311
      %v314 = vcvt.s32.f32 %v312
      %vm315 = vcmp.ne.s32.totalorder %v307, 15
      %vm316 = vcmp.ne.s32.totalorder %v308, 15
      %v317 = vsel %vm315, 1, 0
      %v318 = vsel %vm316, 1, 0
      %v319 = vcvt.s32.f32 %v317
      %v320 = vcvt.s32.f32 %v318
      %v321 = vrot.slane %v280, 7
      %v322 = vrot.slane %v281, 7
      %vm323 = vcmp.lt.s32.totalorder %v283, 1
      %v324 = vsel %vm323, %v321, %v322
      %v325 = vsel %vm323, %v322, %v321
      %v326 = vmul.f32 %v325, %v313
      %v327 = vmul.f32 %v324, %v314
      %v328 = vrot.slane %v280, 1
      %v329 = vrot.slane %v281, 1
      %vm330 = vcmp.lt.s32.totalorder %v283, 7
      %v331 = vsel %vm330, %v328, %v329
      %v332 = vsel %vm330, %v329, %v328
      %v333 = vmul.f32 %v331, %v319
      %v334 = vmul.f32 %v332, %v320
      %v335 = vpack.c.bf16 %v327, %v326
      %v336 = vpack.c.bf16 %v281, %v280
      %v337 = vpack.c.bf16 %v334, %v333
      %v338 = vld [vmem:[%s1] sm:$0xf]
      %v339 = vld [vmem:[%s1 + $0x4] sm:$0xf]
      %v340 = vld [vmem:[%s1 + $0x8] sm:$0xf]
      %v341 = vld [vmem:[%s1 + $0xc] sm:$0xf]
      %v342 = vld [vmem:[%s1 + $0x10] sm:$0xf]
      %v343 = vld [vmem:[%s1 + $0x14] sm:$0xf]
      %v344 = vld [vmem:[%s1 + $0x18] sm:$0xf]
      %v345 = vld [vmem:[%s1 + $0x1c] sm:$0xf]
      %v346 = vld [vmem:[%s1 + $0x20] sm:$0xf]
      %v347 = vld [vmem:[%s1 + $0x24] sm:$0xf]
      %v348 = vld [vmem:[%s1 + $0x28] sm:$0xf]
      %v349 = vld [vmem:[%s1 + $0x2c] sm:$0xf]
      %v350 = vld [vmem:[%s1 + $0x30] sm:$0xf]
      %v351 = vld [vmem:[%s1 + $0x34] sm:$0xf]
      %v352 = vld [vmem:[%s1 + $0x38] sm:$0xf]
      %v353 = vld [vmem:[%s1 + $0x3c] sm:$0xf]
      %v354 = vld [vmem:[%s1 + $0x40] sm:$0xf]
      %v355 = vld [vmem:[%s1 + $0x44] sm:$0xf]
      %v356 = vld [vmem:[%s1 + $0x48] sm:$0xf]
      %v357 = vld [vmem:[%s1 + $0x4c] sm:$0xf]
      %v358 = vld [vmem:[%s1 + $0x50] sm:$0xf]
      %v359 = vld [vmem:[%s1 + $0x54] sm:$0xf]
      %v360 = vld [vmem:[%s1 + $0x58] sm:$0xf]
      %v361 = vld [vmem:[%s1 + $0x5c] sm:$0xf]
      %v362 = vld [vmem:[%s1 + $0x60] sm:$0xf]
      %v363 = vld [vmem:[%s1 + $0x64] sm:$0xf]
      %v364 = vld [vmem:[%s1 + $0x68] sm:$0xf]
      %v365 = vld [vmem:[%s1 + $0x6c] sm:$0xf]
      %v366 = vld [vmem:[%s1 + $0x70] sm:$0xf]
      %v367 = vld [vmem:[%s1 + $0x74] sm:$0xf]
      %v368 = vld [vmem:[%s1 + $0x78] sm:$0xf]
      %v369 = vld [vmem:[%s1 + $0x7c] sm:$0xf]
      %v370 = vld [vmem:[%s1 + $0x80] sm:$0xf]
      %v371 = vld [vmem:[%s1 + $0x84] sm:$0xf]
      %v372 = vld [vmem:[%s1 + $0x88] sm:$0xf]
      %v373 = vld [vmem:[%s1 + $0x8c] sm:$0xf]
      %v374 = vld [vmem:[%s1 + $0x90] sm:$0xf]
      %v375 = vld [vmem:[%s1 + $0x94] sm:$0xf]
      %v376 = vld [vmem:[%s1 + $0x98] sm:$0xf]
      %v377 = vld [vmem:[%s1 + $0x9c] sm:$0xf]
      %v378 = vld [vmem:[%s1 + $0xa0] sm:$0xf]
      %v379 = vld [vmem:[%s1 + $0xa4] sm:$0xf]
      %v380 = vld [vmem:[%s1 + $0xa8] sm:$0xf]
      %v381 = vld [vmem:[%s1 + $0xac] sm:$0xf]
      %v382 = vld [vmem:[%s1 + $0xb0] sm:$0xf]
      %v383 = vld [vmem:[%s1 + $0xb4] sm:$0xf]
      %v384 = vld [vmem:[%s1 + $0xb8] sm:$0xf]
      %v385 = vld [vmem:[%s1 + $0xbc] sm:$0xf]
      %v434 = vunpack.c.l.b16 %v338
      %v435 = vunpack.c.l.b16 %v339
      %v436 = vunpack.c.l.b16 %v340
      %v437 = vunpack.c.l.b16 %v341
      %v438 = vunpack.c.l.b16 %v342
      %v439 = vunpack.c.l.b16 %v343
      %v440 = vunpack.c.l.b16 %v344
      %v441 = vunpack.c.l.b16 %v345
      %v442 = vunpack.c.l.b16 %v346
      %v443 = vunpack.c.l.b16 %v347
      %v444 = vunpack.c.l.b16 %v348
      %v445 = vunpack.c.l.b16 %v349
      %v446 = vunpack.c.l.b16 %v350
      %v447 = vunpack.c.l.b16 %v351
      %v448 = vunpack.c.l.b16 %v352
      %v449 = vunpack.c.l.b16 %v353
      %v450 = vunpack.c.l.b16 %v354
      %v451 = vunpack.c.l.b16 %v355
      %v452 = vunpack.c.l.b16 %v356
      %v453 = vunpack.c.l.b16 %v357
      %v454 = vunpack.c.l.b16 %v358
      %v455 = vunpack.c.l.b16 %v359
      %v456 = vunpack.c.l.b16 %v360
      %v457 = vunpack.c.l.b16 %v361
      %v458 = vunpack.c.l.b16 %v362
      %v459 = vunpack.c.l.b16 %v363
      %v460 = vunpack.c.l.b16 %v364
      %v461 = vunpack.c.l.b16 %v365
      %v462 = vunpack.c.l.b16 %v366
      %v463 = vunpack.c.l.b16 %v367
      %v464 = vunpack.c.l.b16 %v368
      %v465 = vunpack.c.l.b16 %v369
      %v466 = vunpack.c.l.b16 %v370
      %v467 = vunpack.c.l.b16 %v371
      %v468 = vunpack.c.l.b16 %v372
      %v469 = vunpack.c.l.b16 %v373
      %v470 = vunpack.c.l.b16 %v374
      %v471 = vunpack.c.l.b16 %v375
      %v472 = vunpack.c.l.b16 %v376
      %v473 = vunpack.c.l.b16 %v377
      %v474 = vunpack.c.l.b16 %v378
      %v475 = vunpack.c.l.b16 %v379
      %v476 = vunpack.c.l.b16 %v380
      %v477 = vunpack.c.l.b16 %v381
      %v478 = vunpack.c.l.b16 %v382
      %v479 = vunpack.c.l.b16 %v383
      %v480 = vunpack.c.l.b16 %v384
      %v481 = vunpack.c.l.b16 %v385
      %v482 = vpack.c.b16 %v435, %v434
      %v483 = vpack.c.b16 %v437, %v436
      %v484 = vpack.c.b16 %v439, %v438
      %v485 = vpack.c.b16 %v441, %v440
      %v486 = vpack.c.b16 %v443, %v442
      %v487 = vpack.c.b16 %v445, %v444
      %v488 = vpack.c.b16 %v447, %v446
      %v489 = vpack.c.b16 %v449, %v448
      %v490 = vpack.c.b16 %v451, %v450
      %v491 = vpack.c.b16 %v453, %v452
      %v492 = vpack.c.b16 %v455, %v454
      %v493 = vpack.c.b16 %v457, %v456
      %v494 = vpack.c.b16 %v459, %v458
      %v495 = vpack.c.b16 %v461, %v460
      %v496 = vpack.c.b16 %v463, %v462
      %v497 = vpack.c.b16 %v465, %v464
      %v498 = vpack.c.b16 %v467, %v466
      %v499 = vpack.c.b16 %v469, %v468
      %v500 = vpack.c.b16 %v471, %v470
      %v501 = vpack.c.b16 %v473, %v472
      %v502 = vpack.c.b16 %v475, %v474
      %v503 = vpack.c.b16 %v477, %v476
      %v504 = vpack.c.b16 %v479, %v478
      %v505 = vpack.c.b16 %v481, %v480
      %530 = vmatprep.subr.bf16.mxu0 0
      %531 = vmatpush1.bf16.msra.mxu0 %v482
      %532 = vmatprep.subr.bf16.mxu0 0
      %533 = vmatpush1.bf16.msra.mxu0 %v483
      %534 = vmatprep.subr.bf16.mxu0 0
      %535 = vmatpush1.bf16.msra.mxu0 %v484
      %536 = vmatprep.subr.bf16.mxu0 0
      %537 = vmatpush1.bf16.msra.mxu0 %v485
      %538 = vmatprep.subr.bf16.mxu0 0
      %539 = vmatpush1.bf16.msra.mxu0 %v486
      %540 = vmatprep.subr.bf16.mxu0 0
      %541 = vmatpush1.bf16.msra.mxu0 %v487
      %542 = vmatprep.subr.bf16.mxu0 0
      %543 = vmatpush1.bf16.msra.mxu0 %v488
      %544 = vmatprep.subr.bf16.mxu0 0
      %545 = vmatpush1.bf16.msra.mxu0 %v489
      %546 = vmatprep.subr.bf16.mxu0 0
      %547 = vmatpush1.bf16.msra.mxu0 %v490
      %548 = vmatprep.subr.bf16.mxu0 0
      %549 = vmatpush1.bf16.msra.mxu0 %v491
      %550 = vmatprep.subr.bf16.mxu0 0
      %551 = vmatpush1.bf16.msra.mxu0 %v492
      %552 = vmatprep.subr.bf16.mxu0 0
      %553 = vmatpush1.bf16.msra.mxu0 %v493
      %554 = vmatprep.subr.bf16.mxu0 0
      %555 = vmatpush1.bf16.msra.mxu0 %v494
      %556 = vmatprep.subr.bf16.mxu0 0
      %557 = vmatpush1.bf16.msra.mxu0 %v495
      %558 = vmatprep.subr.bf16.mxu0 0
      %559 = vmatpush1.bf16.msra.mxu0 %v496
      %560 = vmatprep.subr.bf16.mxu0 0
      %561 = vmatpush1.bf16.msra.mxu0 %v497
      %562 = vmatprep.mubr.bf16.mxu0 %v336
      %563 = vmatmul.mubr.bf16.gmra.mrb[0].mxu0 %v335
      %v564 = vpop.f32.mrb[0].mxu0
      %v565 = vadd.f32 0.0, %v564
      %v566 = vpop.f32.mrb[0].mxu0
      %v567 = vpop.f32.mrb[0].mxu0
      %v568 = vadd.f32 0.0, %v567
      %v569 = vpop.f32.mrb[0].mxu0
      %570 = vdwg.mxu0
      %571 = vmatprep.subr.bf16.mxu0 0
      %572 = vmatpush1.bf16.msra.mxu0 %v498
      %573 = vmatprep.subr.bf16.mxu0 0
      %574 = vmatpush1.bf16.msra.mxu0 %v499
      %575 = vmatprep.subr.bf16.mxu0 0
      %576 = vmatpush1.bf16.msra.mxu0 %v500
      %577 = vmatprep.subr.bf16.mxu0 0
      %578 = vmatpush1.bf16.msra.mxu0 %v501
      %579 = vmatprep.subr.bf16.mxu0 0
      %580 = vmatpush1.bf16.msra.mxu0 %v502
      %581 = vmatprep.subr.bf16.mxu0 0
      %582 = vmatpush1.bf16.msra.mxu0 %v503
      %583 = vmatprep.subr.bf16.mxu0 0
      %584 = vmatpush1.bf16.msra.mxu0 %v504
      %585 = vmatprep.subr.bf16.mxu0 0
      %586 = vmatpush1.bf16.msra.mxu0 %v505
      %587 = vmatprep.subr.bf16.mxu0 0
      %588 = vmatpush1.bf16.msra.mxu0 0
      %589 = vmatprep.subr.bf16.mxu0 0
      %590 = vmatpush1.bf16.msra.mxu0 0
      %591 = vmatprep.subr.bf16.mxu0 0
      %592 = vmatpush1.bf16.msra.mxu0 0
      %593 = vmatprep.subr.bf16.mxu0 0
      %594 = vmatpush1.bf16.msra.mxu0 0
      %595 = vmatprep.subr.bf16.mxu0 0
      %596 = vmatpush1.bf16.msra.mxu0 0
      %597 = vmatprep.subr.bf16.mxu0 0
      %598 = vmatpush1.bf16.msra.mxu0 0
      %599 = vmatprep.subr.bf16.mxu0 0
      %600 = vmatpush1.bf16.msra.mxu0 0
      %601 = vmatprep.subr.bf16.mxu0 0
      %602 = vmatpush1.bf16.msra.mxu0 0
      %603 = vmatprep.mubr.bf16.mxu0 0
      %604 = vmatmul.mubr.bf16.gmra.mrb[0].mxu0 %v337
      %v605 = vpop.f32.mrb[0].mxu0
      %v606 = vadd.f32 %v565, %v605
      %v607 = vpop.f32.mrb[0].mxu0
      %v608 = vpop.f32.mrb[0].mxu0
      %v609 = vadd.f32 %v568, %v608
      %v610 = vpop.f32.mrb[0].mxu0
      %611 = vdwg.mxu0
      %v612 = vld [vmem:[%s2] sm:$0x1]
      %v614 = vlaneseq
      %v615 = vshrl.u32 %v614, 7
      %v616 = vsub.s32 0, %v615
      %v617 = vrot.slane %v612, %v616
      %v619 = vmul.f32 %v606, %v617
      %v620 = vmul.f32 %v609, %v617
      %v621 = vld [vmem:[%s3] sm:$0x1]
      %v623 = vlaneseq
      %v624 = vshrl.u32 %v623, 7
      %v625 = vsub.s32 0, %v624
      %v626 = vrot.slane %v621, %v625
      %v628 = vadd.f32 %v619, %v626
      %v629 = vadd.f32 %v620, %v626
      %v630 = vmax.f32 %v628, 0.0
      %v631 = vmax.f32 %v629, 0.0
      %v632 = vrot.slane %v630, 7
      %v633 = vrot.slane %v631, 7
      %v634 = vsel %vm323, %v632, %v633
      %v635 = vsel %vm323, %v633, %v632
      %v636 = vmul.f32 %v635, %v313
      %v637 = vmul.f32 %v634, %v314
      %v638 = vrot.slane %v630, 1
      %v639 = vrot.slane %v631, 1
      %v640 = vsel %vm330, %v638, %v639
      %v641 = vsel %vm330, %v639, %v638
      %v642 = vmul.f32 %v640, %v319
      %v643 = vmul.f32 %v641, %v320
      %v644 = vpack.c.bf16 %v637, %v636
      %v645 = vpack.c.bf16 %v631, %v630
      %v646 = vpack.c.bf16 %v643, %v642
      %v647 = vld [vmem:[%s4] sm:$0xf]
      %v648 = vld [vmem:[%s4 + $0x4] sm:$0xf]
      %v649 = vld [vmem:[%s4 + $0x8] sm:$0xf]
      %v650 = vld [vmem:[%s4 + $0xc] sm:$0xf]
      %v651 = vld [vmem:[%s4 + $0x10] sm:$0xf]
      %v652 = vld [vmem:[%s4 + $0x14] sm:$0xf]
      %v653 = vld [vmem:[%s4 + $0x18] sm:$0xf]
      %v654 = vld [vmem:[%s4 + $0x1c] sm:$0xf]
      %v655 = vld [vmem:[%s4 + $0x20] sm:$0xf]
      %v656 = vld [vmem:[%s4 + $0x24] sm:$0xf]
      %v657 = vld [vmem:[%s4 + $0x28] sm:$0xf]
      %v658 = vld [vmem:[%s4 + $0x2c] sm:$0xf]
      %v659 = vld [vmem:[%s4 + $0x30] sm:$0xf]
      %v660 = vld [vmem:[%s4 + $0x34] sm:$0xf]
      %v661 = vld [vmem:[%s4 + $0x38] sm:$0xf]
      %v662 = vld [vmem:[%s4 + $0x3c] sm:$0xf]
      %v663 = vld [vmem:[%s4 + $0x40] sm:$0xf]
      %v664 = vld [vmem:[%s4 + $0x44] sm:$0xf]
      %v665 = vld [vmem:[%s4 + $0x48] sm:$0xf]
      %v666 = vld [vmem:[%s4 + $0x4c] sm:$0xf]
      %v667 = vld [vmem:[%s4 + $0x50] sm:$0xf]
      %v668 = vld [vmem:[%s4 + $0x54] sm:$0xf]
      %v669 = vld [vmem:[%s4 + $0x58] sm:$0xf]
      %v670 = vld [vmem:[%s4 + $0x5c] sm:$0xf]
      %v671 = vld [vmem:[%s4 + $0x60] sm:$0xf]
      %v672 = vld [vmem:[%s4 + $0x64] sm:$0xf]
      %v673 = vld [vmem:[%s4 + $0x68] sm:$0xf]
      %v674 = vld [vmem:[%s4 + $0x6c] sm:$0xf]
      %v675 = vld [vmem:[%s4 + $0x70] sm:$0xf]
      %v676 = vld [vmem:[%s4 + $0x74] sm:$0xf]
      %v677 = vld [vmem:[%s4 + $0x78] sm:$0xf]
      %v678 = vld [vmem:[%s4 + $0x7c] sm:$0xf]
      %v679 = vld [vmem:[%s4 + $0x80] sm:$0xf]
      %v680 = vld [vmem:[%s4 + $0x84] sm:$0xf]
      %v681 = vld [vmem:[%s4 + $0x88] sm:$0xf]
      %v682 = vld [vmem:[%s4 + $0x8c] sm:$0xf]
      %v683 = vld [vmem:[%s4 + $0x90] sm:$0xf]
      %v684 = vld [vmem:[%s4 + $0x94] sm:$0xf]
      %v685 = vld [vmem:[%s4 + $0x98] sm:$0xf]
      %v686 = vld [vmem:[%s4 + $0x9c] sm:$0xf]
      %v687 = vld [vmem:[%s4 + $0xa0] sm:$0xf]
      %v688 = vld [vmem:[%s4 + $0xa4] sm:$0xf]
      %v689 = vld [vmem:[%s4 + $0xa8] sm:$0xf]
      %v690 = vld [vmem:[%s4 + $0xac] sm:$0xf]
      %v691 = vld [vmem:[%s4 + $0xb0] sm:$0xf]
      %v692 = vld [vmem:[%s4 + $0xb4] sm:$0xf]
      %v693 = vld [vmem:[%s4 + $0xb8] sm:$0xf]
      %v694 = vld [vmem:[%s4 + $0xbc] sm:$0xf]
      %v743 = vunpack.c.l.b16 %v647
      %v744 = vunpack.c.l.b16 %v648
      %v745 = vunpack.c.l.b16 %v649
      %v746 = vunpack.c.l.b16 %v650
      %v747 = vunpack.c.l.b16 %v651
      %v748 = vunpack.c.l.b16 %v652
      %v749 = vunpack.c.l.b16 %v653
      %v750 = vunpack.c.l.b16 %v654
      %v751 = vunpack.c.l.b16 %v655
      %v752 = vunpack.c.l.b16 %v656
      %v753 = vunpack.c.l.b16 %v657
      %v754 = vunpack.c.l.b16 %v658
      %v755 = vunpack.c.l.b16 %v659
      %v756 = vunpack.c.l.b16 %v660
      %v757 = vunpack.c.l.b16 %v661
      %v758 = vunpack.c.l.b16 %v662
      %v759 = vunpack.c.l.b16 %v663
      %v760 = vunpack.c.l.b16 %v664
      %v761 = vunpack.c.l.b16 %v665
      %v762 = vunpack.c.l.b16 %v666
      %v763 = vunpack.c.l.b16 %v667
      %v764 = vunpack.c.l.b16 %v668
      %v765 = vunpack.c.l.b16 %v669
      %v766 = vunpack.c.l.b16 %v670
      %v767 = vunpack.c.l.b16 %v671
      %v768 = vunpack.c.l.b16 %v672
      %v769 = vunpack.c.l.b16 %v673
      %v770 = vunpack.c.l.b16 %v674
      %v771 = vunpack.c.l.b16 %v675
      %v772 = vunpack.c.l.b16 %v676
      %v773 = vunpack.c.l.b16 %v677
      %v774 = vunpack.c.l.b16 %v678
      %v775 = vunpack.c.l.b16 %v679
      %v776 = vunpack.c.l.b16 %v680
      %v777 = vunpack.c.l.b16 %v681
      %v778 = vunpack.c.l.b16 %v682
      %v779 = vunpack.c.l.b16 %v683
      %v780 = vunpack.c.l.b16 %v684
      %v781 = vunpack.c.l.b16 %v685
      %v782 = vunpack.c.l.b16 %v686
      %v783 = vunpack.c.l.b16 %v687
      %v784 = vunpack.c.l.b16 %v688
      %v785 = vunpack.c.l.b16 %v689
      %v786 = vunpack.c.l.b16 %v690
      %v787 = vunpack.c.l.b16 %v691
      %v788 = vunpack.c.l.b16 %v692
      %v789 = vunpack.c.l.b16 %v693
      %v790 = vunpack.c.l.b16 %v694
      %v791 = vpack.c.b16 %v744, %v743
      %v792 = vpack.c.b16 %v746, %v745
      %v793 = vpack.c.b16 %v748, %v747
      %v794 = vpack.c.b16 %v750, %v749
      %v795 = vpack.c.b16 %v752, %v751
      %v796 = vpack.c.b16 %v754, %v753
      %v797 = vpack.c.b16 %v756, %v755
      %v798 = vpack.c.b16 %v758, %v757
      %v799 = vpack.c.b16 %v760, %v759
      %v800 = vpack.c.b16 %v762, %v761
      %v801 = vpack.c.b16 %v764, %v763
      %v802 = vpack.c.b16 %v766, %v765
      %v803 = vpack.c.b16 %v768, %v767
      %v804 = vpack.c.b16 %v770, %v769
      %v805 = vpack.c.b16 %v772, %v771
      %v806 = vpack.c.b16 %v774, %v773
      %v807 = vpack.c.b16 %v776, %v775
      %v808 = vpack.c.b16 %v778, %v777
      %v809 = vpack.c.b16 %v780, %v779
      %v810 = vpack.c.b16 %v782, %v781
      %v811 = vpack.c.b16 %v784, %v783
      %v812 = vpack.c.b16 %v786, %v785
      %v813 = vpack.c.b16 %v788, %v787
      %v814 = vpack.c.b16 %v790, %v789
      %839 = vmatprep.subr.bf16.mxu0 0
      %840 = vmatpush1.bf16.msra.mxu0 %v791
      %841 = vmatprep.subr.bf16.mxu0 0
      %842 = vmatpush1.bf16.msra.mxu0 %v792
      %843 = vmatprep.subr.bf16.mxu0 0
      %844 = vmatpush1.bf16.msra.mxu0 %v793
      %845 = vmatprep.subr.bf16.mxu0 0
      %846 = vmatpush1.bf16.msra.mxu0 %v794
      %847 = vmatprep.subr.bf16.mxu0 0
      %848 = vmatpush1.bf16.msra.mxu0 %v795
      %849 = vmatprep.subr.bf16.mxu0 0
      %850 = vmatpush1.bf16.msra.mxu0 %v796
      %851 = vmatprep.subr.bf16.mxu0 0
      %852 = vmatpush1.bf16.msra.mxu0 %v797
      %853 = vmatprep.subr.bf16.mxu0 0
      %854 = vmatpush1.bf16.msra.mxu0 %v798
      %855 = vmatprep.subr.bf16.mxu0 0
      %856 = vmatpush1.bf16.msra.mxu0 %v799
      %857 = vmatprep.subr.bf16.mxu0 0
      %858 = vmatpush1.bf16.msra.mxu0 %v800
      %859 = vmatprep.subr.bf16.mxu0 0
      %860 = vmatpush1.bf16.msra.mxu0 %v801
      %861 = vmatprep.subr.bf16.mxu0 0
      %862 = vmatpush1.bf16.msra.mxu0 %v802
      %863 = vmatprep.subr.bf16.mxu0 0
      %864 = vmatpush1.bf16.msra.mxu0 %v803
      %865 = vmatprep.subr.bf16.mxu0 0
      %866 = vmatpush1.bf16.msra.mxu0 %v804
      %867 = vmatprep.subr.bf16.mxu0 0
      %868 = vmatpush1.bf16.msra.mxu0 %v805
      %869 = vmatprep.subr.bf16.mxu0 0
      %870 = vmatpush1.bf16.msra.mxu0 %v806
      %871 = vmatprep.mubr.bf16.mxu0 %v645
      %872 = vmatmul.mubr.bf16.gmra.mrb[0].mxu0 %v644
      %v873 = vpop.f32.mrb[0].mxu0
      %v874 = vadd.f32 0.0, %v873
      %v875 = vpop.f32.mrb[0].mxu0
      %v876 = vpop.f32.mrb[0].mxu0
      %v877 = vadd.f32 0.0, %v876
      %v878 = vpop.f32.mrb[0].mxu0
      %879 = vdwg.mxu0
      %880 = vmatprep.subr.bf16.mxu0 0
      %881 = vmatpush1.bf16.msra.mxu0 %v807
      %882 = vmatprep.subr.bf16.mxu0 0
      %883 = vmatpush1.bf16.msra.mxu0 %v808
      %884 = vmatprep.subr.bf16.mxu0 0
      %885 = vmatpush1.bf16.msra.mxu0 %v809
      %886 = vmatprep.subr.bf16.mxu0 0
      %887 = vmatpush1.bf16.msra.mxu0 %v810
      %888 = vmatprep.subr.bf16.mxu0 0
      %889 = vmatpush1.bf16.msra.mxu0 %v811
      %890 = vmatprep.subr.bf16.mxu0 0
      %891 = vmatpush1.bf16.msra.mxu0 %v812
      %892 = vmatprep.subr.bf16.mxu0 0
      %893 = vmatpush1.bf16.msra.mxu0 %v813
      %894 = vmatprep.subr.bf16.mxu0 0
      %895 = vmatpush1.bf16.msra.mxu0 %v814
      %896 = vmatprep.subr.bf16.mxu0 0
      %897 = vmatpush1.bf16.msra.mxu0 0
      %898 = vmatprep.subr.bf16.mxu0 0
      %899 = vmatpush1.bf16.msra.mxu0 0
      %900 = vmatprep.subr.bf16.mxu0 0
      %901 = vmatpush1.bf16.msra.mxu0 0
      %902 = vmatprep.subr.bf16.mxu0 0
      %903 = vmatpush1.bf16.msra.mxu0 0
      %904 = vmatprep.subr.bf16.mxu0 0
      %905 = vmatpush1.bf16.msra.mxu0 0
      %906 = vmatprep.subr.bf16.mxu0 0
      %907 = vmatpush1.bf16.msra.mxu0 0
      %908 = vmatprep.subr.bf16.mxu0 0
      %909 = vmatpush1.bf16.msra.mxu0 0
      %910 = vmatprep.subr.bf16.mxu0 0
      %911 = vmatpush1.bf16.msra.mxu0 0
      %912 = vmatprep.mubr.bf16.mxu0 0
      %913 = vmatmul.mubr.bf16.gmra.mrb[0].mxu0 %v646
      %v914 = vpop.f32.mrb[0].mxu0
      %v915 = vadd.f32 %v874, %v914
      %v916 = vpop.f32.mrb[0].mxu0
      %v917 = vpop.f32.mrb[0].mxu0
      %v918 = vadd.f32 %v877, %v917
      %v919 = vpop.f32.mrb[0].mxu0
      %920 = vdwg.mxu0
      %v921 = vld [vmem:[%s5] sm:$0x1]
      %v923 = vlaneseq
      %v924 = vshrl.u32 %v923, 7
      %v925 = vsub.s32 0, %v924
      %v926 = vrot.slane %v921, %v925
      %v928 = vmul.f32 %v915, %v926
      %v929 = vmul.f32 %v918, %v926
      %v930 = vld [vmem:[%s6] sm:$0x1]
      %v932 = vlaneseq
      %v933 = vshrl.u32 %v932, 7
      %v934 = vsub.s32 0, %v933
      %v935 = vrot.slane %v930, %v934
      %v937 = vadd.f32 %v928, %v935
      %v938 = vadd.f32 %v929, %v935
      %v939 = vadd.f32 %v937, %v280
      %v940 = vadd.f32 %v938, %v281
      %v941 = vmax.f32 %v939, 0.0
      %v942 = vmax.f32 %v940, 0.0
      %943 = vst [vmem:[%s278] sm:$0xff] %v941
      %944 = vst [vmem:[%s278 + $0x8] sm:$0xff] %v942
      %p945 = scmp.lt.s32.totalorder %s18, 1
      %s946 = scalar_select %p945, %s18, 1
      %s947 = smul.addr %s946, 2
      %s948 = smul.addr %s947, 8
      %s949 = scalar_lea.vmem %s7, %s948
      // Predicated region
      $region49: #{_lambda_.1} parent=47 // pred_check
        %p950 = pneg %p188
      $region50: #{_lambda_.1} parent=47 // pred_check_branch
        %952 = sbr.rel (%p950) target = $region52
      $region51: #{_lambda_.1} parent=47 // pred_region
        _
      $region52: #{_lambda_.1} parent=47 // pred_fallthru
        _
    $region48: #{_lambda_.1} parent=5 // pred_fallthru
      _
    %p953 = scmp.le.s32.totalorder 2, %s13
    // Predicated region
    $region53: #{_lambda_.1} parent=5 // pred_check
      %p954 = pneg %p953
    $region54: #{_lambda_.1} parent=5 // pred_check_branch
      %956 = sbr.rel (%p954) target = $region56
    $region55: #{_lambda_.1} parent=5 // pred_region
      %s957 = ssub.s32 %s13, 2
      // Predicated region
      $region57: #{_lambda_.1} parent=55 // pred_check
        %p958 = pneg %p194
      $region58: #{_lambda_.1} parent=55 // pred_check_branch
        %960 = sbr.rel (%p958) target = $region60
      $region59: #{_lambda_.1} parent=55 // pred_region
        %p961 = scmp.lt.s32.totalorder %s19, 1
        %s962 = scalar_select %p961, %s19, 1
        %s963 = smul.addr %s962, 2
        %s964 = smul.addr %s963, 8
        %s965 = scalar_lea.vmem %s7, %s964
      $region60: #{_lambda_.1} parent=55 // pred_fallthru
        _
    $region56: #{_lambda_.1} parent=5 // pred_fallthru
      _
  $region6: #{_lambda_.1} parent=0 // loop_footer
    %s17 = sadd.s32 1, %s13
  $region7: #{_lambda_.1} parent=0 // loop_footer_branch
    %12 = sbr.rel target = $region3
  $region8: #{_lambda_.1} parent=0 // loop_exit
    _

</llo_original>
